<compile_context>
chip_gen: v7x
topology: tpu7x:2x2x1
jax: 0.10.0
libtpu: 0.0.40
codegen_flags: <defaults>
</compile_context>

<pallas_src>
import jax
import jax.numpy as jnp
import numpy as np
from jax import lax
from jax.experimental import pallas as pl
from jax.experimental.pallas import tpu as pltpu


def _round_up(v, m):
    return ((v + m - 1) // m) * m


def _agg_kernel(x_ref, w1_ref, gap_ref, wcat_ref, out_ref):
    """One batch b per grid step (all T tiles fused).

    x_ref:    (9C, T*HW) bf16  im2col patches for all T tiles of batch b
    w1_ref:   (F, 9C)    bf16  conv weight (tap-major / channel-minor columns)
    gap_ref:  (T, T*HW)  f32   block-diagonal GAP mask with 1/HW folded in
    wcat_ref: (2F, NCP)  f32   output linear weight [mean half; max half], lane-padded
    out_ref:  (1, NCP)   f32   logits row for batch b (lane-dense)
    """
    # Conv 3x3 / pad 1 / no bias for every tile at once: one fused K=9C MXU matmul.
    h = jnp.maximum(
        jnp.dot(w1_ref[...], x_ref[...], preferred_element_type=jnp.float32),
        0.0)                                                       # (F, T*HW) f32

    # Global average pool per tile: one masked dot (mask carries the 1/HW scale).
    feats = lax.dot_general(gap_ref[...], h, (((1,), (1,)), ((), ())),
                            preferred_element_type=jnp.float32)    # (T, F)

    # 'concat' pooling over the T tiles: [mean_T, max_T] -> (1, 2F).
    mean_f = jnp.mean(feats, axis=0, keepdims=True)                # (1, F)
    max_f = jnp.max(feats, axis=0, keepdims=True)                  # (1, F)
    pooled = jnp.concatenate([mean_f, max_f], axis=-1)             # (1, 2F)

    # output_net = Linear(2F -> NC, bias=False), one dot into a lane-padded row.
    out_ref[...] = jnp.dot(pooled, wcat_ref[...],
                           preferred_element_type=jnp.float32)     # (1, NCP)


def agg_model_forward(x, w_conv, w_out):
    """x: (B, T, H, W, C) f32; w_conv: (F, C, 3, 3); w_out: (NC, 2F) torch layout."""
    B, T, H, W, C = x.shape
    F_ = w_conv.shape[0]
    NC = w_out.shape[0]
    HW = H * W
    N = B * T
    K9C = 9 * C
    THW = T * HW
    NCP = _round_up(NC, 128)                      # lane-dense padded logits width

    # --- plain-JAX glue (one small im2col pass; total ~9x of a 24 KiB input) ---
    # torch .view(-1, c, h, w): raw reinterpretation of the contiguous buffer.
    x_nchw = x.reshape(N, C, H, W)
    xp = jnp.pad(x_nchw, ((0, 0), (0, 0), (1, 1), (1, 1)))          # (N, C, H+2, W+2)
    # 9 shifted windows, tap-major / channel-minor rows (matches w1 column order).
    taps = [xp[:, :, dy:dy + H, dx:dx + W] for dy in range(3) for dx in range(3)]
    stk = jnp.stack(taps, axis=1).reshape(N, K9C, HW)               # (N, 9C, HW)
    stk = (stk.reshape(B, T, K9C, HW)
              .transpose(0, 2, 1, 3)
              .reshape(B, K9C, THW)
              .astype(jnp.bfloat16))                                # (B, 9C, T*HW)

    # conv weight (F, C, 3, 3) -> (F, 9C), tap-major / channel-minor, bf16.
    w1 = jnp.transpose(w_conv, (0, 2, 3, 1)).reshape(F_, K9C).astype(jnp.bfloat16)

    # block-diagonal GAP mask with the 1/HW mean folded in (static, tiny).
    gap_np = np.zeros((T, THW), np.float32)
    for t in range(T):
        gap_np[t, t * HW:(t + 1) * HW] = 1.0 / HW
    gap = jnp.asarray(gap_np)

    # final linear: pooled [mean, max] (1, 2F) x w_out.T (2F, NC), lane-padded to NCP.
    wcat = jnp.zeros((2 * F_, NCP), jnp.float32).at[:, :NC].set(w_out.T)

    flops = B * (2 * F_ * K9C * THW + 2 * T * THW * F_ + 2 * (2 * F_) * NCP)
    bytes_accessed = (stk.size * 2 + w1.size * 2 + gap.size * 4
                      + wcat.size * 4 + B * NCP * 4)

    out = pl.pallas_call(
        _agg_kernel,
        out_shape=jax.ShapeDtypeStruct((B, 1, NCP), jnp.float32),
        grid_spec=pltpu.PrefetchScalarGridSpec(
            num_scalar_prefetch=0,
            grid=(B,),
            in_specs=[
                pl.BlockSpec((None, K9C, THW), lambda b: (b, 0, 0)),
                pl.BlockSpec((F_, K9C), lambda b: (0, 0)),
                pl.BlockSpec((T, THW), lambda b: (0, 0)),
                pl.BlockSpec((2 * F_, NCP), lambda b: (0, 0)),
            ],
            out_specs=pl.BlockSpec((None, 1, NCP), lambda b: (b, 0, 0)),
        ),
        compiler_params=pltpu.CompilerParams(
            dimension_semantics=("parallel",)),
        cost_estimate=pl.CostEstimate(flops=flops, transcendentals=0,
                                      bytes_accessed=bytes_accessed),
    )(stk, w1, gap, wcat)

    return out[:, 0, :NC]


def _reference_forward(x, w_conv, w_out):
    """Pure-JAX f32 reference with a real conv (correctness check)."""
    B, T, H, W, C = x.shape
    F_ = w_conv.shape[0]
    x_nchw = x.reshape(B * T, C, H, W)
    y = lax.conv_general_dilated(
        x_nchw, w_conv, window_strides=(1, 1), padding=((1, 1), (1, 1)),
        dimension_numbers=("NCHW", "OIHW", "NCHW"))
    y = jnp.maximum(y, 0.0)
    feats = jnp.mean(y, axis=(2, 3)).reshape(B, T, F_)
    pooled = jnp.concatenate([jnp.mean(feats, axis=1), jnp.max(feats, axis=1)], axis=-1)
    return jnp.dot(pooled, w_out.T, precision=lax.Precision.HIGHEST)


if __name__ == "__main__":
    B, T, H, W, C = 2, 4, 16, 16, 4     # batch, num_tiles, spatial, channels
    F_ = 32                             # synthetic backbone feature dim
    NUM_CLASSES = 6

    key = jax.random.PRNGKey(0)
    kx, kw1, kw2 = jax.random.split(key, 3)
    x = jax.random.normal(kx, (B, T, H, W, C), dtype=jnp.float32)
    w_conv = jax.random.normal(kw1, (F_, C, 3, 3), dtype=jnp.float32) * 0.1
    w_out = jax.random.normal(kw2, (NUM_CLASSES, 2 * F_), dtype=jnp.float32) * 0.1

    fwd = jax.jit(agg_model_forward)
    out = jax.block_until_ready(fwd(x, w_conv, w_out))
    ref = jax.block_until_ready(_reference_forward(x, w_conv, w_out))

    np.testing.assert_allclose(np.asarray(out), np.asarray(ref), rtol=1e-2, atol=1e-2)
    assert out.shape == (B, NUM_CLASSES)
    print("KERNEL_OK")
</pallas_src>

<mosaic_0001>
module attributes {stable_mosaic.version = 11 : i64} {
  func.func @_agg_kernel(%arg0: i32, %arg1: memref<1x36x1024xbf16, #tpu.memory_space<vmem>>, %arg2: memref<32x36xbf16, #tpu.memory_space<vmem>>, %arg3: memref<4x1024xf32, #tpu.memory_space<vmem>>, %arg4: memref<64x128xf32, #tpu.memory_space<vmem>>, %arg5: memref<1x1x128xf32, #tpu.memory_space<vmem>>) attributes {dimension_semantics = [#tpu.dimension_semantics<parallel>], iteration_bounds = array<i64: 2>, scalar_prefetch = 0 : i64, scratch_operands = 0 : i64, tpu.core_type = #tpu.core_type<tc>, window_params = [{transform_indices = @transform_0, window_bounds = array<i64: 1, 36, 1024>}, {pipeline_mode = #tpu.pipeline_mode<synchronous>, transform_indices = @transform_1, window_bounds = array<i64: 32, 36>}, {pipeline_mode = #tpu.pipeline_mode<synchronous>, transform_indices = @transform_2, window_bounds = array<i64: 4, 1024>}, {pipeline_mode = #tpu.pipeline_mode<synchronous>, transform_indices = @transform_3, window_bounds = array<i64: 64, 128>}, {transform_indices = @transform_4, window_bounds = array<i64: 1, 1, 128>}]} {
    %c0 = arith.constant 0 : index
    %c0_0 = arith.constant 0 : index
    %0 = vector.load %arg2[%c0, %c0_0] : memref<32x36xbf16, #tpu.memory_space<vmem>>, vector<32x36xbf16>
    %c0_1 = arith.constant 0 : index
    %c0_2 = arith.constant 0 : index
    %c0_3 = arith.constant 0 : index
    %1 = vector.load %arg1[%c0_1, %c0_2, %c0_3] : memref<1x36x1024xbf16, #tpu.memory_space<vmem>>, vector<1x36x1024xbf16>
    %2 = vector.shape_cast %1 : vector<1x36x1024xbf16> to vector<36x1024xbf16>
    %cst = arith.constant dense<0.000000e+00> : vector<32x1024xf32>
    %3 = tpu.matmul %0, %2, %cst {dimension_numbers = #tpu.dot_dimension_numbers<[1], [0], [0], [1], [0, 0, 1, 1], [], []>} : vector<32x36xbf16>, vector<36x1024xbf16>, vector<32x1024xf32> -> vector<32x1024xf32>
    %cst_4 = arith.constant 0.000000e+00 : f32
    %4 = vector.broadcast %cst_4 : f32 to vector<32x1024xf32>
    %5 = arith.maximumf %3, %4 : vector<32x1024xf32>
    %c0_5 = arith.constant 0 : index
    %c0_6 = arith.constant 0 : index
    %6 = vector.load %arg3[%c0_5, %c0_6] : memref<4x1024xf32, #tpu.memory_space<vmem>>, vector<4x1024xf32>
    %cst_7 = arith.constant dense<0.000000e+00> : vector<4x32xf32>
    %7 = tpu.matmul %6, %5, %cst_7 {dimension_numbers = #tpu.dot_dimension_numbers<[1], [1], [0], [0], [0, 0, 1, 0], [], []>} : vector<4x1024xf32>, vector<32x1024xf32>, vector<4x32xf32> -> vector<4x32xf32>
    %cst_8 = arith.constant dense<0.000000e+00> : vector<32xf32>
    %8 = vector.multi_reduction <add>, %7, %cst_8 [0] : vector<4x32xf32> to vector<32xf32>
    %9 = vector.shape_cast %8 : vector<32xf32> to vector<1x32xf32>
    %cst_9 = arith.constant 4.000000e+00 : f32
    %10 = vector.broadcast %cst_9 : f32 to vector<1x32xf32>
    %11 = arith.divf %9, %10 : vector<1x32xf32>
    %cst_10 = arith.constant dense<0xFF800000> : vector<32xf32>
    %12 = vector.multi_reduction <maximumf>, %7, %cst_10 [0] : vector<4x32xf32> to vector<32xf32>
    %13 = vector.shape_cast %12 : vector<32xf32> to vector<1x32xf32>
    %14 = tpu.concatenate %11, %13 in 1 : vector<1x32xf32>, vector<1x32xf32> -> vector<1x64xf32>
    %c0_11 = arith.constant 0 : index
    %c0_12 = arith.constant 0 : index
    %15 = vector.load %arg4[%c0_11, %c0_12] : memref<64x128xf32, #tpu.memory_space<vmem>>, vector<64x128xf32>
    %cst_13 = arith.constant dense<0.000000e+00> : vector<1x128xf32>
    %16 = tpu.matmul %14, %15, %cst_13 {dimension_numbers = #tpu.dot_dimension_numbers<[1], [0], [0], [1], [0, 0, 1, 1], [], []>} : vector<1x64xf32>, vector<64x128xf32>, vector<1x128xf32> -> vector<1x128xf32>
    %c0_14 = arith.constant 0 : index
    %c0_15 = arith.constant 0 : index
    %c0_16 = arith.constant 0 : index
    %17 = vector.load %arg5[%c0_14, %c0_15, %c0_16] : memref<1x1x128xf32, #tpu.memory_space<vmem>>, vector<1x1x128xf32>
    %18 = vector.shape_cast %17 : vector<1x1x128xf32> to vector<1x128xf32>
    %19 = vector.shape_cast %16 : vector<1x128xf32> to vector<1x1x128xf32>
    tpu.vector_store %arg5[%c0_14, %c0_15, %c0_16], %19 {strides = array<i32>} : memref<1x1x128xf32, #tpu.memory_space<vmem>>, vector<1x1x128xf32>,
    return
  }
  func.func @transform_0(%arg0: i32) -> (i32, i32, i32) {
    %c0_i32 = arith.constant 0 : i32
    %c0_i32_0 = arith.constant 0 : i32
    %c0_i32_1 = arith.constant 0 : i32
    return %arg0, %c0_i32, %c0_i32_0 : i32, i32, i32
  }
  func.func @transform_1(%arg0: i32) -> (i32, i32) {
    %c0_i32 = arith.constant 0 : i32
    %c0_i32_0 = arith.constant 0 : i32
    %c0_i32_1 = arith.constant 0 : i32
    return %c0_i32, %c0_i32_0 : i32, i32
  }
  func.func @transform_2(%arg0: i32) -> (i32, i32) {
    %c0_i32 = arith.constant 0 : i32
    %c0_i32_0 = arith.constant 0 : i32
    %c0_i32_1 = arith.constant 0 : i32
    return %c0_i32, %c0_i32_0 : i32, i32
  }
  func.func @transform_3(%arg0: i32) -> (i32, i32) {
    %c0_i32 = arith.constant 0 : i32
    %c0_i32_0 = arith.constant 0 : i32
    %c0_i32_1 = arith.constant 0 : i32
    return %c0_i32, %c0_i32_0 : i32, i32
  }
  func.func @transform_4(%arg0: i32) -> (i32, i32, i32) {
    %c0_i32 = arith.constant 0 : i32
    %c0_i32_0 = arith.constant 0 : i32
    %c0_i32_1 = arith.constant 0 : i32
    return %arg0, %c0_i32, %c0_i32_0 : i32, i32, i32
  }
}

</mosaic_0001>

<llo_original>
// kernel: agg_model_forward.1
$region0: #{agg_model_forward.1}
  #allocation0 [shape = 'u32[]', space=smem, size = 0x4, offset = 0x4, fixed_abs, tag = 'smem constant byte address 0x4 - core index']
  #allocation1 [shape = 'u32[144,128]{1,0:T(1,128)}', space=vmem, size = 0x12000, scoped, tag = 'internal scratch']
  %s0 = inlined_call_operand.vmem [shape: bf16[2,36,1024], index: 0, kind: input, shape index: {}]
  %s1 = inlined_call_operand.vmem [shape: bf16[32,36], index: 1, kind: input, shape index: {}]
  %s2 = inlined_call_operand.vmem [shape: f32[4,1024], index: 2, kind: input, shape index: {}]
  %s3 = inlined_call_operand.vmem [shape: f32[64,128], index: 3, kind: input, shape index: {}]
  %s4 = inlined_call_operand.hbm [shape: f32[2,1,128], index: 4, kind: output, shape index: {}]
  %s5 = sld [smem:[#allocation0]]
  $region49: #{agg_model_forward.1} parent=0
    _
  %s7 = ssub.s32 1, %s5
  %s8 = scalar_select 0, %s7, %s5
  $region1: #{agg_model_forward.1} parent=0
    #allocation2 [shape = 'u8[1024]{0}', space=vmem, size = 0x400, scoped, tag = 'output window, operand 0']
    #allocation3 [shape = 's32[2]{0}', space=sflag, size = 0x8, scoped, tag = 'scoped memory for agg_model_forward.1']
    %9 = vsyncpa [#allocation3], 0
    %s10 = scalar_lea.sflag [#allocation3], 1
    %11 = vsyncpa %s10, 0
    loop: start=0, step=1, limit=4
    $region2: #{agg_model_forward.1} parent=1 // loop_pre_header
      _
    $region3: #{agg_model_forward.1} parent=1 // loop_header
      %s13 = sphi 0, %s17
      %p14 = scmp.ge.s32.totalorder %s13, 4
      %s23 = sphi 0, %s25
      %s26 = sphi 0, %s23
      %s27 = sphi 0, %s26
      %s43 = sphi 0, %s27
      %s47 = sphi 0, %s47
      %s49 = sphi 0, %s47
      %s50 = sphi 0, %s49
      %s64 = sphi 0, %s50
      %s68 = sphi 0, %s68
      %s70 = sphi 0, %s68
      %s71 = sphi 0, %s70
      %s85 = sphi 0, %s71
      %s89 = sphi 0, %s89
      %s91 = sphi 0, %s89
      %s92 = sphi 0, %s91
      %s106 = sphi 0, %s92
      %s112 = sphi 0, %s114
      %s115 = sphi 0, %s112
      %s116 = sphi 0, %s115
      %s132 = sphi 0, %s116
    $region4: #{agg_model_forward.1} parent=1 // loop_header_branch
      %16 = sbr.rel (%p14) target = $region8
    $region5: #{agg_model_forward.1} parent=1 // loop_body
      %s18 = ssub.s32 %s13, 1
      %s19 = ssub.s32 %s13, 2
      %s20 = sadd.s32 %s13, 1
      %s21 = ssub.s32 %s13, %s20
      %p22 = scmp.eq.s32.totalorder %s21, 0
      %s24 = sadd.s32 %s23, 1
      %s25 = scalar_select %p22, %s23, %s24
      %p28 = pneg %p22
      %p29 = scmp.eq.s32.totalorder %s13, 1
      %p30 = por %p28, %p29
      %p31 = scmp.ne.s32.totalorder %s23, %s26
      %p32 = scmp.eq.s32.totalorder %s13, 0
      %p33 = por %p31, %p32
      %p34 = scmp.ne.s32.totalorder %s23, %s26
      %p35 = scmp.eq.s32.totalorder %s18, 1
      %p36 = por %p34, %p35
      %p37 = scmp.ne.s32.totalorder %s26, %s27
      %p38 = scmp.eq.s32.totalorder %s18, 0
      %p39 = por %p37, %p38
      %p40 = scmp.ne.s32.totalorder %s26, %s27
      %p41 = scmp.eq.s32.totalorder %s19, 1
      %p42 = por %p40, %p41
      %p44 = scmp.ne.s32.totalorder %s27, %s43
      %p45 = scmp.eq.s32.totalorder %s19, 0
      %p46 = por %p44, %p45
      %s48 = sadd.s32 %s47, 1
      %p51 = scmp.eq.s32.totalorder %s13, 1
      %p52 = scmp.ne.s32.totalorder %s47, %s49
      %p53 = scmp.eq.s32.totalorder %s13, 0
      %p54 = por %p52, %p53
      %p55 = scmp.ne.s32.totalorder %s47, %s49
      %p56 = scmp.eq.s32.totalorder %s18, 1
      %p57 = por %p55, %p56
      %p58 = scmp.ne.s32.totalorder %s49, %s50
      %p59 = scmp.eq.s32.totalorder %s18, 0
      %p60 = por %p58, %p59
      %p61 = scmp.ne.s32.totalorder %s49, %s50
      %p62 = scmp.eq.s32.totalorder %s19, 1
      %p63 = por %p61, %p62
      %p65 = scmp.ne.s32.totalorder %s50, %s64
      %p66 = scmp.eq.s32.totalorder %s19, 0
      %p67 = por %p65, %p66
      %s69 = sadd.s32 %s68, 1
      %p72 = scmp.eq.s32.totalorder %s13, 1
      %p73 = scmp.ne.s32.totalorder %s68, %s70
      %p74 = scmp.eq.s32.totalorder %s13, 0
      %p75 = por %p73, %p74
      %p76 = scmp.ne.s32.totalorder %s68, %s70
      %p77 = scmp.eq.s32.totalorder %s18, 1
      %p78 = por %p76, %p77
      %p79 = scmp.ne.s32.totalorder %s70, %s71
      %p80 = scmp.eq.s32.totalorder %s18, 0
      %p81 = por %p79, %p80
      %p82 = scmp.ne.s32.totalorder %s70, %s71
      %p83 = scmp.eq.s32.totalorder %s19, 1
      %p84 = por %p82, %p83
      %p86 = scmp.ne.s32.totalorder %s71, %s85
      %p87 = scmp.eq.s32.totalorder %s19, 0
      %p88 = por %p86, %p87
      %s90 = sadd.s32 %s89, 1
      %p93 = scmp.eq.s32.totalorder %s13, 1
      %p94 = scmp.ne.s32.totalorder %s89, %s91
      %p95 = scmp.eq.s32.totalorder %s13, 0
      %p96 = por %p94, %p95
      %p97 = scmp.ne.s32.totalorder %s89, %s91
      %p98 = scmp.eq.s32.totalorder %s18, 1
      %p99 = por %p97, %p98
      %p100 = scmp.ne.s32.totalorder %s91, %s92
      %p101 = scmp.eq.s32.totalorder %s18, 0
      %p102 = por %p100, %p101
      %p103 = scmp.ne.s32.totalorder %s91, %s92
      %p104 = scmp.eq.s32.totalorder %s19, 1
      %p105 = por %p103, %p104
      %p107 = scmp.ne.s32.totalorder %s92, %s106
      %p108 = scmp.eq.s32.totalorder %s19, 0
      %p109 = por %p107, %p108
      %s110 = ssub.s32 %s13, %s20
      %p111 = scmp.eq.s32.totalorder %s110, 0
      %s113 = sadd.s32 %s112, 1
      %s114 = scalar_select %p111, %s112, %s113
      %p117 = pneg %p111
      %p118 = scmp.eq.s32.totalorder %s13, 1
      %p119 = por %p117, %p118
      %p120 = scmp.ne.s32.totalorder %s112, %s115
      %p121 = scmp.eq.s32.totalorder %s13, 0
      %p122 = por %p120, %p121
      %p123 = scmp.ne.s32.totalorder %s112, %s115
      %p124 = scmp.eq.s32.totalorder %s18, 1
      %p125 = por %p123, %p124
      %p126 = scmp.ne.s32.totalorder %s115, %s116
      %p127 = scmp.eq.s32.totalorder %s18, 0
      %p128 = por %p126, %p127
      %p129 = scmp.ne.s32.totalorder %s115, %s116
      %p130 = scmp.eq.s32.totalorder %s19, 1
      %p131 = por %p129, %p130
      %p133 = scmp.ne.s32.totalorder %s116, %s132
      %p134 = scmp.eq.s32.totalorder %s19, 0
      %p135 = por %p133, %p134
      %p136 = scmp.le.s32.totalorder 1, %s13
      %p137 = scmp.lt.s32.totalorder %s13, 3
      %p138 = pnand %p136, %p137
      %p139 = pneg %p138
      // Predicated region
      $region9: #{agg_model_forward.1} parent=5 // pred_check
        _
      $region10: #{agg_model_forward.1} parent=5 // pred_check_branch
        %141 = sbr.rel (%p138) target = $region12
      $region11: #{agg_model_forward.1} parent=5 // pred_region
        %s142 = ssub.s32 %s13, 1
        // Predicated region
        $region13: #{agg_model_forward.1} parent=11 // pred_check
          %p143 = pneg %p60
        $region14: #{agg_model_forward.1} parent=11 // pred_check_branch
          %145 = sbr.rel (%p143) target = $region16
        $region15: #{agg_model_forward.1} parent=11 // pred_region
          _
        $region16: #{agg_model_forward.1} parent=11 // pred_fallthru
          _
        // Predicated region
        $region17: #{agg_model_forward.1} parent=11 // pred_check
          %p146 = pneg %p81
        $region18: #{agg_model_forward.1} parent=11 // pred_check_branch
          %148 = sbr.rel (%p146) target = $region20
        $region19: #{agg_model_forward.1} parent=11 // pred_region
          _
        $region20: #{agg_model_forward.1} parent=11 // pred_fallthru
          _
        // Predicated region
        $region21: #{agg_model_forward.1} parent=11 // pred_check
          %p149 = pneg %p102
        $region22: #{agg_model_forward.1} parent=11 // pred_check_branch
          %151 = sbr.rel (%p149) target = $region24
        $region23: #{agg_model_forward.1} parent=11 // pred_region
          _
        $region24: #{agg_model_forward.1} parent=11 // pred_fallthru
          _
      $region12: #{agg_model_forward.1} parent=5 // pred_fallthru
        _
      %p152 = scmp.lt.s32.totalorder %s13, 2
      // Predicated region
      $region25: #{agg_model_forward.1} parent=5 // pred_check
        %p153 = pneg %p152
      $region26: #{agg_model_forward.1} parent=5 // pred_check_branch
        %155 = sbr.rel (%p153) target = $region28
      $region27: #{agg_model_forward.1} parent=5 // pred_region
        // Predicated region
        $region29: #{agg_model_forward.1} parent=27 // pred_check
          %p156 = pneg %p33
        $region30: #{agg_model_forward.1} parent=27 // pred_check_branch
          %158 = sbr.rel (%p156) target = $region32
        $region31: #{agg_model_forward.1} parent=27 // pred_region
          %p159 = scmp.lt.s32.totalorder %s13, 1
          %s160 = scalar_select %p159, %s13, 1
          %s161 = smul.addr %s160, 40
          %s162 = smul.addr %s161, 4
          %s163 = scalar_lea.vmem %s0, %s162
        $region32: #{agg_model_forward.1} parent=27 // pred_fallthru
          _
      $region28: #{agg_model_forward.1} parent=5 // pred_fallthru
        _
      %p164 = scmp.le.s32.totalorder 1, %s13
      %p165 = scmp.lt.s32.totalorder %s13, 3
      %p166 = pnand %p164, %p165
      %p167 = pneg %p166
      // Predicated region
      $region33: #{agg_model_forward.1} parent=5 // pred_check
        _
      $region34: #{agg_model_forward.1} parent=5 // pred_check_branch
        %169 = sbr.rel (%p166) target = $region36
      $region35: #{agg_model_forward.1} parent=5 // pred_region
        %s170 = ssub.s32 %s13, 1
        %p171 = scmp.lt.s32.totalorder %s18, 1
        %s172 = scalar_select %p171, %s18, 1
        %s173 = smul.addr %s172, 40
        %s174 = smul.addr %s173, 4
        %s175 = scalar_lea.vmem %s0, %s174
        %p176 = pneg %p39
        %p177 = pneg %p36
        %p178 = pneg %p60
        %p179 = pneg %p57
        %p180 = pneg %p81
        %p181 = pneg %p78
        %p182 = pneg %p102
        %p183 = pneg %p99
        %p184 = pneg %p128
        %p185 = pneg %p125
        %s186 = sand.u32 %s115, 1
        %s187 = scalar_lea.sflag [#allocation3], %s186
        %s188 = sand.u32 %s115, 1
        %s189 = scalar_lea.vmem [#allocation2], %s188
        %p190 = scmp.lt.s32.totalorder %s18, 1
        %s191 = scalar_select %p190, %s18, 1
        %s192 = smul.addr %s191, 40
        %s193 = smul.addr %s192, 4
        %s194 = scalar_lea.vmem %s0, %s193
        %v196 = vld [vmem:[%s1] sm:$0xf]
        %v197 = vld [vmem:[%s1 + $0x4] sm:$0xf]
        %v198 = vld [vmem:[%s1 + $0x8] sm:$0xf]
        %v199 = vld [vmem:[%s1 + $0xc] sm:$0xf]
        %v200 = vld [vmem:[%s194] sm:$0xff]
        %v201 = vld [vmem:[%s194 + $0x8] sm:$0xff]
        %v202 = vld [vmem:[%s194 + $0x10] sm:$0xff]
        %v203 = vld [vmem:[%s194 + $0x18] sm:$0xff]
        %v204 = vld [vmem:[%s194 + $0x20] sm:$0xff]
        %v205 = vld [vmem:[%s194 + $0x28] sm:$0xff]
        %v206 = vld [vmem:[%s194 + $0x30] sm:$0xff]
        %v207 = vld [vmem:[%s194 + $0x38] sm:$0xff]
        %v208 = vld [vmem:[%s194 + $0x40] sm:$0xff]
        %v209 = vld [vmem:[%s194 + $0x48] sm:$0xff]
        %v210 = vld [vmem:[%s194 + $0x50] sm:$0xff]
        %v211 = vld [vmem:[%s194 + $0x58] sm:$0xff]
        %v212 = vld [vmem:[%s194 + $0x60] sm:$0xff]
        %v213 = vld [vmem:[%s194 + $0x68] sm:$0xff]
        %v214 = vld [vmem:[%s194 + $0x70] sm:$0xff]
        %v215 = vld [vmem:[%s194 + $0x78] sm:$0xff]
        %v216 = vld [vmem:[%s194 + $0x80] sm:$0x33]
        %v217 = vld [vmem:[%s194 + $0x88] sm:$0x33]
        %v218 = vld [vmem:[%s194 + $0x90] sm:$0x33]
        %v219 = vld [vmem:[%s194 + $0x98] sm:$0x33]
        %v224 = vunpack.c.l.b16 %v196
        %v225 = vunpack.c.l.b16 %v197
        %v226 = vunpack.c.l.b16 %v198
        %v227 = vunpack.c.l.b16 %v199
        %v228 = vpack.c.b16 %v225, %v224
        %v229 = vpack.c.b16 %v227, %v226
        %v250 = vunpack.c.l.b16 %v200
        %v251 = vunpack.c.h.b16 %v200
        %v252 = vunpack.c.l.b16 %v201
        %v253 = vunpack.c.h.b16 %v201
        %v254 = vunpack.c.l.b16 %v202
        %v255 = vunpack.c.h.b16 %v202
        %v256 = vunpack.c.l.b16 %v203
        %v257 = vunpack.c.h.b16 %v203
        %v258 = vunpack.c.l.b16 %v204
        %v259 = vunpack.c.h.b16 %v204
        %v260 = vunpack.c.l.b16 %v205
        %v261 = vunpack.c.h.b16 %v205
        %v262 = vunpack.c.l.b16 %v206
        %v263 = vunpack.c.h.b16 %v206
        %v264 = vunpack.c.l.b16 %v207
        %v265 = vunpack.c.h.b16 %v207
        %v266 = vunpack.c.l.b16 %v208
        %v267 = vunpack.c.h.b16 %v208
        %v268 = vunpack.c.l.b16 %v209
        %v269 = vunpack.c.h.b16 %v209
        %v270 = vunpack.c.l.b16 %v210
        %v271 = vunpack.c.h.b16 %v210
        %v272 = vunpack.c.l.b16 %v211
        %v273 = vunpack.c.h.b16 %v211
        %v274 = vunpack.c.l.b16 %v212
        %v275 = vunpack.c.h.b16 %v212
        %v276 = vunpack.c.l.b16 %v213
        %v277 = vunpack.c.h.b16 %v213
        %v278 = vunpack.c.l.b16 %v214
        %v279 = vunpack.c.h.b16 %v214
        %v280 = vunpack.c.l.b16 %v215
        %v281 = vunpack.c.h.b16 %v215
        %v282 = vunpack.c.l.b16 %v216
        %v283 = vunpack.c.h.b16 %v216
        %v284 = vunpack.c.l.b16 %v217
        %v285 = vunpack.c.h.b16 %v217
        %v286 = vunpack.c.l.b16 %v218
        %v287 = vunpack.c.h.b16 %v218
        %v288 = vunpack.c.l.b16 %v219
        %v289 = vunpack.c.h.b16 %v219
        %v290 = vpack.c.b16 %v258, %v250
        %v291 = vpack.c.b16 %v259, %v251
        %v292 = vpack.c.b16 %v260, %v252
        %v293 = vpack.c.b16 %v261, %v253
        %v294 = vpack.c.b16 %v262, %v254
        %v295 = vpack.c.b16 %v263, %v255
        %v296 = vpack.c.b16 %v264, %v256
        %v297 = vpack.c.b16 %v265, %v257
        %v298 = vpack.c.b16 %v274, %v266
        %v299 = vpack.c.b16 %v275, %v267
        %v300 = vpack.c.b16 %v276, %v268
        %v301 = vpack.c.b16 %v277, %v269
        %v302 = vpack.c.b16 %v278, %v270
        %v303 = vpack.c.b16 %v279, %v271
        %v304 = vpack.c.b16 %v280, %v272
        %v305 = vpack.c.b16 %v281, %v273
        %v306 = vpack.c.b16 %v282, %v282
        %v307 = vpack.c.b16 %v283, %v283
        %v308 = vpack.c.b16 %v284, %v284
        %v309 = vpack.c.b16 %v285, %v285
        %v310 = vpack.c.b16 %v286, %v286
        %v311 = vpack.c.b16 %v287, %v287
        %v312 = vpack.c.b16 %v288, %v288
        %v313 = vpack.c.b16 %v289, %v289
        %vm330 = vcmask 293888
        %v332 = vsel %vm330, %v228, 0
        %v335 = vsel %vm330, %v229, 0
        %vm337 = vcmask 1041408
        %v339 = vsel %vm337, %v306, 0
        %v342 = vsel %vm337, %v307, 0
        %v345 = vsel %vm337, %v308, 0
        %v348 = vsel %vm337, %v309, 0
        %v351 = vsel %vm337, %v310, 0
        %v354 = vsel %vm337, %v311, 0
        %v357 = vsel %vm337, %v312, 0
        %v360 = vsel %vm337, %v313, 0
        %362 = vmatprep.subr.bf16.mxu0 %v291
        %363 = vmatpush1.bf16.msra.mxu0 %v290
        %364 = vmatprep.subr.bf16.mxu0 %v299
        %365 = vmatpush1.bf16.msra.mxu0 %v298
        %366 = vmatprep.subr.bf16.mxu0 %v342
        %367 = vmatpush1.bf16.msra.mxu0 %v339
        %368 = vmatprep.subr.bf16.mxu0 0
        %369 = vmatpush1.bf16.msra.mxu0 0
        %370 = vmatprep.subr.bf16.mxu0 0
        %371 = vmatpush1.bf16.msra.mxu0 0
        %372 = vmatprep.subr.bf16.mxu0 0
        %373 = vmatpush1.bf16.msra.mxu0 0
        %374 = vmatprep.subr.bf16.mxu0 0
        %375 = vmatpush1.bf16.msra.mxu0 0
        %376 = vmatprep.subr.bf16.mxu0 0
        %377 = vmatpush1.bf16.msra.mxu0 0
        %378 = vmatprep.subr.bf16.mxu0 0
        %379 = vmatpush1.bf16.msra.mxu0 0
        %380 = vmatprep.subr.bf16.mxu0 0
        %381 = vmatpush1.bf16.msra.mxu0 0
        %382 = vmatprep.subr.bf16.mxu0 0
        %383 = vmatpush1.bf16.msra.mxu0 0
        %384 = vmatprep.subr.bf16.mxu0 0
        %385 = vmatpush1.bf16.msra.mxu0 0
        %386 = vmatprep.subr.bf16.mxu0 0
        %387 = vmatpush1.bf16.msra.mxu0 0
        %388 = vmatprep.subr.bf16.mxu0 0
        %389 = vmatpush1.bf16.msra.mxu0 0
        %390 = vmatprep.subr.bf16.mxu0 0
        %391 = vmatpush1.bf16.msra.mxu0 0
        %392 = vmatprep.subr.bf16.mxu0 0
        %393 = vmatpush1.bf16.msra.mxu0 0
        %394 = vmatprep.mubr.bf16.mxu0 0
        %395 = vmatmul.mubr.bf16.gmra.mrb[0].mxu0 %v332
        %v396 = vpop.f32.mrb[0].mxu0
        %v397 = vadd.f32 0.0, %v396
        %v398 = vpop.f32.mrb[0].mxu0
        %v399 = vadd.f32 0.0, %v398
        %v400 = vpop.f32.mrb[0].mxu0
        %v401 = vadd.f32 0.0, %v400
        %v402 = vpop.f32.mrb[0].mxu0
        %v403 = vadd.f32 0.0, %v402
        %404 = vmatprep.mubr.bf16.mxu0 0
        %405 = vmatmul.mubr.bf16.gmra.mrb[0].mxu0 %v335
        %v406 = vpop.f32.mrb[0].mxu0
        %v407 = vadd.f32 0.0, %v406
        %v408 = vpop.f32.mrb[0].mxu0
        %v409 = vadd.f32 0.0, %v408
        %v410 = vpop.f32.mrb[0].mxu0
        %v411 = vadd.f32 0.0, %v410
        %v412 = vpop.f32.mrb[0].mxu0
        %v413 = vadd.f32 0.0, %v412
        %414 = vdwg.mxu0
        %415 = vmatprep.subr.bf16.mxu0 %v293
        %416 = vmatpush1.bf16.msra.mxu0 %v292
        %417 = vmatprep.subr.bf16.mxu0 %v301
        %418 = vmatpush1.bf16.msra.mxu0 %v300
        %419 = vmatprep.subr.bf16.mxu0 %v348
        %420 = vmatpush1.bf16.msra.mxu0 %v345
        %421 = vmatprep.subr.bf16.mxu0 0
        %422 = vmatpush1.bf16.msra.mxu0 0
        %423 = vmatprep.subr.bf16.mxu0 0
        %424 = vmatpush1.bf16.msra.mxu0 0
        %425 = vmatprep.subr.bf16.mxu0 0
        %426 = vmatpush1.bf16.msra.mxu0 0
        %427 = vmatprep.subr.bf16.mxu0 0
        %428 = vmatpush1.bf16.msra.mxu0 0
        %429 = vmatprep.subr.bf16.mxu0 0
        %430 = vmatpush1.bf16.msra.mxu0 0
        %431 = vmatprep.subr.bf16.mxu0 0
        %432 = vmatpush1.bf16.msra.mxu0 0
        %433 = vmatprep.subr.bf16.mxu0 0
        %434 = vmatpush1.bf16.msra.mxu0 0
        %435 = vmatprep.subr.bf16.mxu0 0
        %436 = vmatpush1.bf16.msra.mxu0 0
        %437 = vmatprep.subr.bf16.mxu0 0
        %438 = vmatpush1.bf16.msra.mxu0 0
        %439 = vmatprep.subr.bf16.mxu0 0
        %440 = vmatpush1.bf16.msra.mxu0 0
        %441 = vmatprep.subr.bf16.mxu0 0
        %442 = vmatpush1.bf16.msra.mxu0 0
        %443 = vmatprep.subr.bf16.mxu0 0
        %444 = vmatpush1.bf16.msra.mxu0 0
        %445 = vmatprep.subr.bf16.mxu0 0
        %446 = vmatpush1.bf16.msra.mxu0 0
        %447 = vmatprep.mubr.bf16.mxu0 0
        %448 = vmatmul.mubr.bf16.gmra.mrb[0].mxu0 %v332
        %v449 = vpop.f32.mrb[0].mxu0
        %v450 = vadd.f32 0.0, %v449
        %v451 = vpop.f32.mrb[0].mxu0
        %v452 = vadd.f32 0.0, %v451
        %v453 = vpop.f32.mrb[0].mxu0
        %v454 = vadd.f32 0.0, %v453
        %v455 = vpop.f32.mrb[0].mxu0
        %v456 = vadd.f32 0.0, %v455
        %457 = vmatprep.mubr.bf16.mxu0 0
        %458 = vmatmul.mubr.bf16.gmra.mrb[0].mxu0 %v335
        %v459 = vpop.f32.mrb[0].mxu0
        %v460 = vadd.f32 0.0, %v459
        %v461 = vpop.f32.mrb[0].mxu0
        %v462 = vadd.f32 0.0, %v461
        %v463 = vpop.f32.mrb[0].mxu0
        %v464 = vadd.f32 0.0, %v463
        %v465 = vpop.f32.mrb[0].mxu0
        %v466 = vadd.f32 0.0, %v465
        %467 = vdwg.mxu0
        %468 = vmatprep.subr.bf16.mxu0 %v295
        %469 = vmatpush1.bf16.msra.mxu0 %v294
        %470 = vmatprep.subr.bf16.mxu0 %v303
        %471 = vmatpush1.bf16.msra.mxu0 %v302
        %472 = vmatprep.subr.bf16.mxu0 %v354
        %473 = vmatpush1.bf16.msra.mxu0 %v351
        %474 = vmatprep.subr.bf16.mxu0 0
        %475 = vmatpush1.bf16.msra.mxu0 0
        %476 = vmatprep.subr.bf16.mxu0 0
        %477 = vmatpush1.bf16.msra.mxu0 0
        %478 = vmatprep.subr.bf16.mxu0 0
        %479 = vmatpush1.bf16.msra.mxu0 0
        %480 = vmatprep.subr.bf16.mxu0 0
        %481 = vmatpush1.bf16.msra.mxu0 0
        %482 = vmatprep.subr.bf16.mxu0 0
        %483 = vmatpush1.bf16.msra.mxu0 0
        %484 = vmatprep.subr.bf16.mxu0 0
        %485 = vmatpush1.bf16.msra.mxu0 0
        %486 = vmatprep.subr.bf16.mxu0 0
        %487 = vmatpush1.bf16.msra.mxu0 0
        %488 = vmatprep.subr.bf16.mxu0 0
        %489 = vmatpush1.bf16.msra.mxu0 0
        %490 = vmatprep.subr.bf16.mxu0 0
        %491 = vmatpush1.bf16.msra.mxu0 0
        %492 = vmatprep.subr.bf16.mxu0 0
        %493 = vmatpush1.bf16.msra.mxu0 0
        %494 = vmatprep.subr.bf16.mxu0 0
        %495 = vmatpush1.bf16.msra.mxu0 0
        %496 = vmatprep.subr.bf16.mxu0 0
        %497 = vmatpush1.bf16.msra.mxu0 0
        %498 = vmatprep.subr.bf16.mxu0 0
        %499 = vmatpush1.bf16.msra.mxu0 0
        %500 = vmatprep.mubr.bf16.mxu0 0
        %501 = vmatmul.mubr.bf16.gmra.mrb[0].mxu0 %v332
        %v502 = vpop.f32.mrb[0].mxu0
        %v503 = vadd.f32 0.0, %v502
        %v504 = vpop.f32.mrb[0].mxu0
        %v505 = vadd.f32 0.0, %v504
        %v506 = vpop.f32.mrb[0].mxu0
        %v507 = vadd.f32 0.0, %v506
        %v508 = vpop.f32.mrb[0].mxu0
        %v509 = vadd.f32 0.0, %v508
        %510 = vmatprep.mubr.bf16.mxu0 0
        %511 = vmatmul.mubr.bf16.gmra.mrb[0].mxu0 %v335
        %v512 = vpop.f32.mrb[0].mxu0
        %v513 = vadd.f32 0.0, %v512
        %v514 = vpop.f32.mrb[0].mxu0
        %v515 = vadd.f32 0.0, %v514
        %v516 = vpop.f32.mrb[0].mxu0
        %v517 = vadd.f32 0.0, %v516
        %v518 = vpop.f32.mrb[0].mxu0
        %v519 = vadd.f32 0.0, %v518
        %520 = vdwg.mxu0
        %521 = vmatprep.subr.bf16.mxu0 %v297
        %522 = vmatpush1.bf16.msra.mxu0 %v296
        %523 = vmatprep.subr.bf16.mxu0 %v305
        %524 = vmatpush1.bf16.msra.mxu0 %v304
        %525 = vmatprep.subr.bf16.mxu0 %v360
        %526 = vmatpush1.bf16.msra.mxu0 %v357
        %527 = vmatprep.subr.bf16.mxu0 0
        %528 = vmatpush1.bf16.msra.mxu0 0
        %529 = vmatprep.subr.bf16.mxu0 0
        %530 = vmatpush1.bf16.msra.mxu0 0
        %531 = vmatprep.subr.bf16.mxu0 0
        %532 = vmatpush1.bf16.msra.mxu0 0
        %533 = vmatprep.subr.bf16.mxu0 0
        %534 = vmatpush1.bf16.msra.mxu0 0
        %535 = vmatprep.subr.bf16.mxu0 0
        %536 = vmatpush1.bf16.msra.mxu0 0
        %537 = vmatprep.subr.bf16.mxu0 0
        %538 = vmatpush1.bf16.msra.mxu0 0
        %539 = vmatprep.subr.bf16.mxu0 0
        %540 = vmatpush1.bf16.msra.mxu0 0
        %541 = vmatprep.subr.bf16.mxu0 0
        %542 = vmatpush1.bf16.msra.mxu0 0
        %543 = vmatprep.subr.bf16.mxu0 0
        %544 = vmatpush1.bf16.msra.mxu0 0
        %545 = vmatprep.subr.bf16.mxu0 0
        %546 = vmatpush1.bf16.msra.mxu0 0
        %547 = vmatprep.subr.bf16.mxu0 0
        %548 = vmatpush1.bf16.msra.mxu0 0
        %549 = vmatprep.subr.bf16.mxu0 0
        %550 = vmatpush1.bf16.msra.mxu0 0
        %551 = vmatprep.subr.bf16.mxu0 0
        %552 = vmatpush1.bf16.msra.mxu0 0
        %553 = vmatprep.mubr.bf16.mxu0 0
        %554 = vmatmul.mubr.bf16.gmra.mrb[0].mxu0 %v332
        %v555 = vpop.f32.mrb[0].mxu0
        %v556 = vadd.f32 0.0, %v555
        %v557 = vpop.f32.mrb[0].mxu0
        %v558 = vadd.f32 0.0, %v557
        %v559 = vpop.f32.mrb[0].mxu0
        %v560 = vadd.f32 0.0, %v559
        %v561 = vpop.f32.mrb[0].mxu0
        %v562 = vadd.f32 0.0, %v561
        %563 = vmatprep.mubr.bf16.mxu0 0
        %564 = vmatmul.mubr.bf16.gmra.mrb[0].mxu0 %v335
        %v565 = vpop.f32.mrb[0].mxu0
        %v566 = vadd.f32 0.0, %v565
        %v567 = vpop.f32.mrb[0].mxu0
        %v568 = vadd.f32 0.0, %v567
        %v569 = vpop.f32.mrb[0].mxu0
        %v570 = vadd.f32 0.0, %v569
        %v571 = vpop.f32.mrb[0].mxu0
        %v572 = vadd.f32 0.0, %v571
        %573 = vdwg.mxu0
        %v574 = vmax.f32 %v397, 0.0
        %v575 = vmax.f32 %v399, 0.0
        %v576 = vmax.f32 %v450, 0.0
        %v577 = vmax.f32 %v452, 0.0
        %v578 = vmax.f32 %v503, 0.0
        %v579 = vmax.f32 %v505, 0.0
        %v580 = vmax.f32 %v556, 0.0
        %v581 = vmax.f32 %v558, 0.0
        %v582 = vmax.f32 %v401, 0.0
        %v583 = vmax.f32 %v403, 0.0
        %v584 = vmax.f32 %v454, 0.0
        %v585 = vmax.f32 %v456, 0.0
        %v586 = vmax.f32 %v507, 0.0
        %v587 = vmax.f32 %v509, 0.0
        %v588 = vmax.f32 %v560, 0.0
        %v589 = vmax.f32 %v562, 0.0
        %v590 = vmax.f32 %v407, 0.0
        %v591 = vmax.f32 %v409, 0.0
        %v592 = vmax.f32 %v460, 0.0
        %v593 = vmax.f32 %v462, 0.0
        %v594 = vmax.f32 %v513, 0.0
        %v595 = vmax.f32 %v515, 0.0
        %v596 = vmax.f32 %v566, 0.0
        %v597 = vmax.f32 %v568, 0.0
        %v598 = vmax.f32 %v411, 0.0
        %v599 = vmax.f32 %v413, 0.0
        %v600 = vmax.f32 %v464, 0.0
        %v601 = vmax.f32 %v466, 0.0
        %v602 = vmax.f32 %v517, 0.0
        %v603 = vmax.f32 %v519, 0.0
        %v604 = vmax.f32 %v570, 0.0
        %v605 = vmax.f32 %v572, 0.0
        %v606 = vld [vmem:[%s2] sm:$0xff]
        %v607 = vld [vmem:[%s2 + $0x8] sm:$0xff]
        %v608 = vld [vmem:[%s2 + $0x10] sm:$0xff]
        %v609 = vld [vmem:[%s2 + $0x18] sm:$0xff]
        %v614 = vcombine.high %v606, %v606
        %v615 = vcombine.high %v607, %v607
        %v616 = vcombine.high %v608, %v608
        %v617 = vcombine.high %v609, %v609
        %622 = vmatprep.subr.mxu0 %v575
        %623 = vmatpush1.xpose.msra.mxu0 %v574
        %624 = vmatprep.subr.mxu0 %v583
        %625 = vmatpush1.xpose.msra.mxu0 %v582
        %626 = vmatprep.subr.mxu0 %v591
        %627 = vmatpush1.xpose.msra.mxu0 %v590
        %628 = vmatprep.subr.mxu0 %v599
        %629 = vmatpush1.xpose.msra.mxu0 %v598
        %630 = vmatprep.subr.mxu0 0.0
        %631 = vmatpush1.xpose.msra.mxu0 0.0
        %632 = vmatprep.subr.mxu0 0.0
        %633 = vmatpush1.xpose.msra.mxu0 0.0
        %634 = vmatprep.subr.mxu0 0.0
        %635 = vmatpush1.xpose.msra.mxu0 0.0
        %636 = vmatprep.subr.mxu0 0.0
        %637 = vmatpush1.xpose.msra.mxu0 0.0
        %638 = vmatprep.subr.mxu0 0.0
        %639 = vmatpush1.xpose.msra.mxu0 0.0
        %640 = vmatprep.subr.mxu0 0.0
        %641 = vmatpush1.xpose.msra.mxu0 0.0
        %642 = vmatprep.subr.mxu0 0.0
        %643 = vmatpush1.xpose.msra.mxu0 0.0
        %644 = vmatprep.subr.mxu0 0.0
        %645 = vmatpush1.xpose.msra.mxu0 0.0
        %646 = vmatprep.subr.mxu0 0.0
        %647 = vmatpush1.xpose.msra.mxu0 0.0
        %648 = vmatprep.subr.mxu0 0.0
        %649 = vmatpush1.xpose.msra.mxu0 0.0
        %650 = vmatprep.subr.mxu0 0.0
        %651 = vmatpush1.xpose.msra.mxu0 0.0
        %652 = vmatprep.subr.mxu0 0.0
        %653 = vmatpush1.xpose.msra.mxu0 0.0
        %654 = vmatprep.subr.mxu0 0.0
        %655 = vmatpush1.xpose.msra.mxu0 0.0
        %656 = vmatprep.subr.mxu0 0.0
        %657 = vmatpush1.xpose.msra.mxu0 0.0
        %658 = vmatprep.subr.mxu0 0.0
        %659 = vmatpush1.xpose.msra.mxu0 0.0
        %660 = vmatprep.subr.mxu0 0.0
        %661 = vmatpush1.xpose.msra.mxu0 0.0
        %662 = vmatprep.subr.mxu0 0.0
        %663 = vmatpush1.xpose.msra.mxu0 0.0
        %664 = vmatprep.subr.mxu0 0.0
        %665 = vmatpush1.xpose.msra.mxu0 0.0
        %666 = vmatprep.subr.mxu0 0.0
        %667 = vmatpush1.xpose.msra.mxu0 0.0
        %668 = vmatprep.subr.mxu0 0.0
        %669 = vmatpush1.xpose.msra.mxu0 0.0
        %670 = vmatprep.subr.mxu0 0.0
        %671 = vmatpush1.xpose.msra.mxu0 0.0
        %672 = vmatprep.subr.mxu0 0.0
        %673 = vmatpush1.xpose.msra.mxu0 0.0
        %674 = vmatprep.subr.mxu0 0.0
        %675 = vmatpush1.xpose.msra.mxu0 0.0
        %676 = vmatprep.subr.mxu0 0.0
        %677 = vmatpush1.xpose.msra.mxu0 0.0
        %678 = vmatprep.subr.mxu0 0.0
        %679 = vmatpush1.xpose.msra.mxu0 0.0
        %680 = vmatprep.subr.mxu0 0.0
        %681 = vmatpush1.xpose.msra.mxu0 0.0
        %682 = vmatprep.subr.mxu0 0.0
        %683 = vmatpush1.xpose.msra.mxu0 0.0
        %684 = vmatprep.subr.mxu0 0.0
        %685 = vmatpush1.xpose.msra.mxu0 0.0
        %686 = vmatprep.mubr.f32.mxu0 %v614
        %687 = vmatmul.mubr.f32.gmra.mrb[0].mxu0 %v606
        %v688 = vpop.f32.mrb[0].mxu0
        %v689 = vadd.f32 0.0, %v688
        %v690 = vpop.f32.mrb[0].mxu0
        %691 = vdwg.mxu0
        %692 = vmatprep.subr.mxu0 %v577
        %693 = vmatpush1.xpose.msra.mxu0 %v576
        %694 = vmatprep.subr.mxu0 %v585
        %695 = vmatpush1.xpose.msra.mxu0 %v584
        %696 = vmatprep.subr.mxu0 %v593
        %697 = vmatpush1.xpose.msra.mxu0 %v592
        %698 = vmatprep.subr.mxu0 %v601
        %699 = vmatpush1.xpose.msra.mxu0 %v600
        %700 = vmatprep.subr.mxu0 0.0
        %701 = vmatpush1.xpose.msra.mxu0 0.0
        %702 = vmatprep.subr.mxu0 0.0
        %703 = vmatpush1.xpose.msra.mxu0 0.0
        %704 = vmatprep.subr.mxu0 0.0
        %705 = vmatpush1.xpose.msra.mxu0 0.0
        %706 = vmatprep.subr.mxu0 0.0
        %707 = vmatpush1.xpose.msra.mxu0 0.0
        %708 = vmatprep.subr.mxu0 0.0
        %709 = vmatpush1.xpose.msra.mxu0 0.0
        %710 = vmatprep.subr.mxu0 0.0
        %711 = vmatpush1.xpose.msra.mxu0 0.0
        %712 = vmatprep.subr.mxu0 0.0
        %713 = vmatpush1.xpose.msra.mxu0 0.0
        %714 = vmatprep.subr.mxu0 0.0
        %715 = vmatpush1.xpose.msra.mxu0 0.0
        %716 = vmatprep.subr.mxu0 0.0
        %717 = vmatpush1.xpose.msra.mxu0 0.0
        %718 = vmatprep.subr.mxu0 0.0
        %719 = vmatpush1.xpose.msra.mxu0 0.0
        %720 = vmatprep.subr.mxu0 0.0
        %721 = vmatpush1.xpose.msra.mxu0 0.0
        %722 = vmatprep.subr.mxu0 0.0
        %723 = vmatpush1.xpose.msra.mxu0 0.0
        %724 = vmatprep.subr.mxu0 0.0
        %725 = vmatpush1.xpose.msra.mxu0 0.0
        %726 = vmatprep.subr.mxu0 0.0
        %727 = vmatpush1.xpose.msra.mxu0 0.0
        %728 = vmatprep.subr.mxu0 0.0
        %729 = vmatpush1.xpose.msra.mxu0 0.0
        %730 = vmatprep.subr.mxu0 0.0
        %731 = vmatpush1.xpose.msra.mxu0 0.0
        %732 = vmatprep.subr.mxu0 0.0
        %733 = vmatpush1.xpose.msra.mxu0 0.0
        %734 = vmatprep.subr.mxu0 0.0
        %735 = vmatpush1.xpose.msra.mxu0 0.0
        %736 = vmatprep.subr.mxu0 0.0
        %737 = vmatpush1.xpose.msra.mxu0 0.0
        %738 = vmatprep.subr.mxu0 0.0
        %739 = vmatpush1.xpose.msra.mxu0 0.0
        %740 = vmatprep.subr.mxu0 0.0
        %741 = vmatpush1.xpose.msra.mxu0 0.0
        %742 = vmatprep.subr.mxu0 0.0
        %743 = vmatpush1.xpose.msra.mxu0 0.0
        %744 = vmatprep.subr.mxu0 0.0
        %745 = vmatpush1.xpose.msra.mxu0 0.0
        %746 = vmatprep.subr.mxu0 0.0
        %747 = vmatpush1.xpose.msra.mxu0 0.0
        %748 = vmatprep.subr.mxu0 0.0
        %749 = vmatpush1.xpose.msra.mxu0 0.0
        %750 = vmatprep.subr.mxu0 0.0
        %751 = vmatpush1.xpose.msra.mxu0 0.0
        %752 = vmatprep.subr.mxu0 0.0
        %753 = vmatpush1.xpose.msra.mxu0 0.0
        %754 = vmatprep.subr.mxu0 0.0
        %755 = vmatpush1.xpose.msra.mxu0 0.0
        %756 = vmatprep.mubr.f32.mxu0 %v615
        %757 = vmatmul.mubr.f32.gmra.mrb[0].mxu0 %v607
        %v758 = vpop.f32.mrb[0].mxu0
        %v759 = vadd.f32 %v689, %v758
        %v760 = vpop.f32.mrb[0].mxu0
        %761 = vdwg.mxu0
        %762 = vmatprep.subr.mxu0 %v579
        %763 = vmatpush1.xpose.msra.mxu0 %v578
        %764 = vmatprep.subr.mxu0 %v587
        %765 = vmatpush1.xpose.msra.mxu0 %v586
        %766 = vmatprep.subr.mxu0 %v595
        %767 = vmatpush1.xpose.msra.mxu0 %v594
        %768 = vmatprep.subr.mxu0 %v603
        %769 = vmatpush1.xpose.msra.mxu0 %v602
        %770 = vmatprep.subr.mxu0 0.0
        %771 = vmatpush1.xpose.msra.mxu0 0.0
        %772 = vmatprep.subr.mxu0 0.0
        %773 = vmatpush1.xpose.msra.mxu0 0.0
        %774 = vmatprep.subr.mxu0 0.0
        %775 = vmatpush1.xpose.msra.mxu0 0.0
        %776 = vmatprep.subr.mxu0 0.0
        %777 = vmatpush1.xpose.msra.mxu0 0.0
        %778 = vmatprep.subr.mxu0 0.0
        %779 = vmatpush1.xpose.msra.mxu0 0.0
        %780 = vmatprep.subr.mxu0 0.0
        %781 = vmatpush1.xpose.msra.mxu0 0.0
        %782 = vmatprep.subr.mxu0 0.0
        %783 = vmatpush1.xpose.msra.mxu0 0.0
        %784 = vmatprep.subr.mxu0 0.0
        %785 = vmatpush1.xpose.msra.mxu0 0.0
        %786 = vmatprep.subr.mxu0 0.0
        %787 = vmatpush1.xpose.msra.mxu0 0.0
        %788 = vmatprep.subr.mxu0 0.0
        %789 = vmatpush1.xpose.msra.mxu0 0.0
        %790 = vmatprep.subr.mxu0 0.0
        %791 = vmatpush1.xpose.msra.mxu0 0.0
        %792 = vmatprep.subr.mxu0 0.0
        %793 = vmatpush1.xpose.msra.mxu0 0.0
        %794 = vmatprep.subr.mxu0 0.0
        %795 = vmatpush1.xpose.msra.mxu0 0.0
        %796 = vmatprep.subr.mxu0 0.0
        %797 = vmatpush1.xpose.msra.mxu0 0.0
        %798 = vmatprep.subr.mxu0 0.0
        %799 = vmatpush1.xpose.msra.mxu0 0.0
        %800 = vmatprep.subr.mxu0 0.0
        %801 = vmatpush1.xpose.msra.mxu0 0.0
        %802 = vmatprep.subr.mxu0 0.0
        %803 = vmatpush1.xpose.msra.mxu0 0.0
        %804 = vmatprep.subr.mxu0 0.0
        %805 = vmatpush1.xpose.msra.mxu0 0.0
        %806 = vmatprep.subr.mxu0 0.0
        %807 = vmatpush1.xpose.msra.mxu0 0.0
        %808 = vmatprep.subr.mxu0 0.0
        %809 = vmatpush1.xpose.msra.mxu0 0.0
        %810 = vmatprep.subr.mxu0 0.0
        %811 = vmatpush1.xpose.msra.mxu0 0.0
        %812 = vmatprep.subr.mxu0 0.0
        %813 = vmatpush1.xpose.msra.mxu0 0.0
        %814 = vmatprep.subr.mxu0 0.0
        %815 = vmatpush1.xpose.msra.mxu0 0.0
        %816 = vmatprep.subr.mxu0 0.0
        %817 = vmatpush1.xpose.msra.mxu0 0.0
        %818 = vmatprep.subr.mxu0 0.0
        %819 = vmatpush1.xpose.msra.mxu0 0.0
        %820 = vmatprep.subr.mxu0 0.0
        %821 = vmatpush1.xpose.msra.mxu0 0.0
        %822 = vmatprep.subr.mxu0 0.0
        %823 = vmatpush1.xpose.msra.mxu0 0.0
        %824 = vmatprep.subr.mxu0 0.0
        %825 = vmatpush1.xpose.msra.mxu0 0.0
        %826 = vmatprep.mubr.f32.mxu0 %v616
        %827 = vmatmul.mubr.f32.gmra.mrb[0].mxu0 %v608
        %v828 = vpop.f32.mrb[0].mxu0
        %v829 = vadd.f32 %v759, %v828
        %v830 = vpop.f32.mrb[0].mxu0
        %831 = vdwg.mxu0
        %832 = vmatprep.subr.mxu0 %v581
        %833 = vmatpush1.xpose.msra.mxu0 %v580
        %834 = vmatprep.subr.mxu0 %v589
        %835 = vmatpush1.xpose.msra.mxu0 %v588
        %836 = vmatprep.subr.mxu0 %v597
        %837 = vmatpush1.xpose.msra.mxu0 %v596
        %838 = vmatprep.subr.mxu0 %v605
        %839 = vmatpush1.xpose.msra.mxu0 %v604
        %840 = vmatprep.subr.mxu0 0.0
        %841 = vmatpush1.xpose.msra.mxu0 0.0
        %842 = vmatprep.subr.mxu0 0.0
        %843 = vmatpush1.xpose.msra.mxu0 0.0
        %844 = vmatprep.subr.mxu0 0.0
        %845 = vmatpush1.xpose.msra.mxu0 0.0
        %846 = vmatprep.subr.mxu0 0.0
        %847 = vmatpush1.xpose.msra.mxu0 0.0
        %848 = vmatprep.subr.mxu0 0.0
        %849 = vmatpush1.xpose.msra.mxu0 0.0
        %850 = vmatprep.subr.mxu0 0.0
        %851 = vmatpush1.xpose.msra.mxu0 0.0
        %852 = vmatprep.subr.mxu0 0.0
        %853 = vmatpush1.xpose.msra.mxu0 0.0
        %854 = vmatprep.subr.mxu0 0.0
        %855 = vmatpush1.xpose.msra.mxu0 0.0
        %856 = vmatprep.subr.mxu0 0.0
        %857 = vmatpush1.xpose.msra.mxu0 0.0
        %858 = vmatprep.subr.mxu0 0.0
        %859 = vmatpush1.xpose.msra.mxu0 0.0
        %860 = vmatprep.subr.mxu0 0.0
        %861 = vmatpush1.xpose.msra.mxu0 0.0
        %862 = vmatprep.subr.mxu0 0.0
        %863 = vmatpush1.xpose.msra.mxu0 0.0
        %864 = vmatprep.subr.mxu0 0.0
        %865 = vmatpush1.xpose.msra.mxu0 0.0
        %866 = vmatprep.subr.mxu0 0.0
        %867 = vmatpush1.xpose.msra.mxu0 0.0
        %868 = vmatprep.subr.mxu0 0.0
        %869 = vmatpush1.xpose.msra.mxu0 0.0
        %870 = vmatprep.subr.mxu0 0.0
        %871 = vmatpush1.xpose.msra.mxu0 0.0
        %872 = vmatprep.subr.mxu0 0.0
        %873 = vmatpush1.xpose.msra.mxu0 0.0
        %874 = vmatprep.subr.mxu0 0.0
        %875 = vmatpush1.xpose.msra.mxu0 0.0
        %876 = vmatprep.subr.mxu0 0.0
        %877 = vmatpush1.xpose.msra.mxu0 0.0
        %878 = vmatprep.subr.mxu0 0.0
        %879 = vmatpush1.xpose.msra.mxu0 0.0
        %880 = vmatprep.subr.mxu0 0.0
        %881 = vmatpush1.xpose.msra.mxu0 0.0
        %882 = vmatprep.subr.mxu0 0.0
        %883 = vmatpush1.xpose.msra.mxu0 0.0
        %884 = vmatprep.subr.mxu0 0.0
        %885 = vmatpush1.xpose.msra.mxu0 0.0
        %886 = vmatprep.subr.mxu0 0.0
        %887 = vmatpush1.xpose.msra.mxu0 0.0
        %888 = vmatprep.subr.mxu0 0.0
        %889 = vmatpush1.xpose.msra.mxu0 0.0
        %890 = vmatprep.subr.mxu0 0.0
        %891 = vmatpush1.xpose.msra.mxu0 0.0
        %892 = vmatprep.subr.mxu0 0.0
        %893 = vmatpush1.xpose.msra.mxu0 0.0
        %894 = vmatprep.subr.mxu0 0.0
        %895 = vmatpush1.xpose.msra.mxu0 0.0
        %896 = vmatprep.mubr.f32.mxu0 %v617
        %897 = vmatmul.mubr.f32.gmra.mrb[0].mxu0 %v609
        %v898 = vpop.f32.mrb[0].mxu0
        %v899 = vadd.f32 %v829, %v898
        %v900 = vpop.f32.mrb[0].mxu0
        %901 = vdwg.mxu0
        %vm902 = vcmask 257024
        %v903 = vsel %vm902, %v899, 0.0
        %v904 = vrot.slane %v903, 4
        %v905 = vadd.f32 %v903, %v904
        %v906 = vrot.slane %v905, 2
        %v907 = vadd.f32 %v905, %v906
        %v908 = vrot.slane %v907, 1
        %v909 = vadd.f32 %v907, %v908
        %v910 = vrcp.pop 4.0
        %v911 = vmul.f32 %v909, %v910
        %v912 = vsel %vm902, %v899, -inf
        %v913 = vrot.slane %v912, 4
        %v914 = vmax.f32 %v912, %v913
        %v915 = vrot.slane %v914, 2
        %v916 = vmax.f32 %v914, %v915
        %v917 = vrot.slane %v916, 1
        %v918 = vmax.f32 %v916, %v917
        %920 = vrot.lane.b32.xlu0 %v918, 32
        %v921 = vpop.permute.xlu0 %920
        %vm923 = vcmask 261120
        %v924 = vsel %vm923, %v911, %v921
        %v925 = vld [vmem:[%s3] sm:$0xff]
        %v926 = vld [vmem:[%s3 + $0x8] sm:$0xff]
        %v927 = vld [vmem:[%s3 + $0x10] sm:$0xff]
        %v928 = vld [vmem:[%s3 + $0x18] sm:$0xff]
        %v929 = vld [vmem:[%s3 + $0x20] sm:$0xff]
        %v930 = vld [vmem:[%s3 + $0x28] sm:$0xff]
        %v931 = vld [vmem:[%s3 + $0x30] sm:$0xff]
        %v932 = vld [vmem:[%s3 + $0x38] sm:$0xff]
        %vm933 = vcmask 523264
        %v935 = vsel %vm933, %v924, 0
        %937 = vmatprep.subr.mxu0 0.0
        %938 = vmatpush1.msra.mxu0 %v925
        %939 = vmatprep.subr.mxu0 0.0
        %940 = vmatpush1.msra.mxu0 %v926
        %941 = vmatprep.subr.mxu0 0.0
        %942 = vmatpush1.msra.mxu0 %v927
        %943 = vmatprep.subr.mxu0 0.0
        %944 = vmatpush1.msra.mxu0 %v928
        %945 = vmatprep.subr.mxu0 0.0
        %946 = vmatpush1.msra.mxu0 %v929
        %947 = vmatprep.subr.mxu0 0.0
        %948 = vmatpush1.msra.mxu0 %v930
        %949 = vmatprep.subr.mxu0 0.0
        %950 = vmatpush1.msra.mxu0 %v931
        %951 = vmatprep.subr.mxu0 0.0
        %952 = vmatpush1.msra.mxu0 %v932
        %953 = vmatprep.subr.mxu0 0.0
        %954 = vmatpush1.msra.mxu0 0.0
        %955 = vmatprep.subr.mxu0 0.0
        %956 = vmatpush1.msra.mxu0 0.0
        %957 = vmatprep.subr.mxu0 0.0
        %958 = vmatpush1.msra.mxu0 0.0
        %959 = vmatprep.subr.mxu0 0.0
        %960 = vmatpush1.msra.mxu0 0.0
        %961 = vmatprep.subr.mxu0 0.0
        %962 = vmatpush1.msra.mxu0 0.0
        %963 = vmatprep.subr.mxu0 0.0
        %964 = vmatpush1.msra.mxu0 0.0
        %965 = vmatprep.subr.mxu0 0.0
        %966 = vmatpush1.msra.mxu0 0.0
        %967 = vmatprep.subr.mxu0 0.0
        %968 = vmatpush1.msra.mxu0 0.0
        %969 = vmatprep.subr.mxu0 0.0
        %970 = vmatpush1.msra.mxu0 0.0
        %971 = vmatprep.subr.mxu0 0.0
        %972 = vmatpush1.msra.mxu0 0.0
        %973 = vmatprep.subr.mxu0 0.0
        %974 = vmatpush1.msra.mxu0 0.0
        %975 = vmatprep.subr.mxu0 0.0
        %976 = vmatpush1.msra.mxu0 0.0
        %977 = vmatprep.subr.mxu0 0.0
        %978 = vmatpush1.msra.mxu0 0.0
        %979 = vmatprep.subr.mxu0 0.0
        %980 = vmatpush1.msra.mxu0 0.0
        %981 = vmatprep.subr.mxu0 0.0
        %982 = vmatpush1.msra.mxu0 0.0
        %983 = vmatprep.subr.mxu0 0.0
        %984 = vmatpush1.msra.mxu0 0.0
        %985 = vmatprep.subr.mxu0 0.0
        %986 = vmatpush1.msra.mxu0 0.0
        %987 = vmatprep.subr.mxu0 0.0
        %988 = vmatpush1.msra.mxu0 0.0
        %989 = vmatprep.subr.mxu0 0.0
        %990 = vmatpush1.msra.mxu0 0.0
        %991 = vmatprep.subr.mxu0 0.0
        %992 = vmatpush1.msra.mxu0 0.0
        %993 = vmatprep.subr.mxu0 0.0
        %994 = vmatpush1.msra.mxu0 0.0
        %995 = vmatprep.subr.mxu0 0.0
        %996 = vmatpush1.msra.mxu0 0.0
        %997 = vmatprep.subr.mxu0 0.0
        %998 = vmatpush1.msra.mxu0 0.0
        %999 = vmatprep.subr.mxu0 0.0
        %1000 = vmatpush1.msra.mxu0 0.0
        %1001 = vmatprep.mubr.f32.mxu0 0.0
        %1002 = vmatmul.mubr.f32.gmra.mrb[0].mxu0 %v935
        %v1003 = vpop.f32.mrb[0].mxu0
        %v1004 = vadd.f32 0.0, %v1003
        %v1005 = vpop.f32.mrb[0].mxu0
        %1006 = vdwg.mxu0
        %1007 = vst [vmem:[%s189] sm:$0x1] %v1004
        %s1008 = sand.u32 %s115, 1
        %s1009 = scalar_lea.sflag [#allocation3], %s1008
        %s1010 = sand.u32 %s115, 1
        %s1011 = scalar_lea.vmem [#allocation2], %s1010
        // Predicated region
        $region37: #{agg_model_forward.1} parent=35 // pred_check
          %p1012 = pneg %p125
        $region38: #{agg_model_forward.1} parent=35 // pred_check_branch
          %1014 = sbr.rel (%p1012) target = $region40
        $region39: #{agg_model_forward.1} parent=35 // pred_region
          %s1016 = ssub.s32 16, 16
          %1017 = vsyncadd %s1009, %s1016
          %s1018 = smul.addr %s18, 16
          %s1019 = scalar_lea.hbm %s4, %s1018
          %s1021 = sshll.u32 %s1011, 4
          %s1022 = int_to_ptr.vmem [resolvable:$true] %s1021
          %1024 = dma.vmem_to_hbm [thread:$0]  %s1022, 16, %s1019, %s1009
        $region40: #{agg_model_forward.1} parent=35 // pred_fallthru
          _
      $region36: #{agg_model_forward.1} parent=5 // pred_fallthru
        _
      %p1025 = scmp.le.s32.totalorder 2, %s13
      // Predicated region
      $region41: #{agg_model_forward.1} parent=5 // pred_check
        %p1026 = pneg %p1025
      $region42: #{agg_model_forward.1} parent=5 // pred_check_branch
        %1028 = sbr.rel (%p1026) target = $region44
      $region43: #{agg_model_forward.1} parent=5 // pred_region
        %s1029 = ssub.s32 %s13, 2
        // Predicated region
        $region45: #{agg_model_forward.1} parent=43 // pred_check
          %p1030 = pneg %p131
        $region46: #{agg_model_forward.1} parent=43 // pred_check_branch
          %1032 = sbr.rel (%p1030) target = $region48
        $region47: #{agg_model_forward.1} parent=43 // pred_region
          %s1033 = sand.u32 %s116, 1
          %s1034 = scalar_lea.sflag [#allocation3], %s1033
          %s1035 = sand.u32 %s116, 1
          %s1036 = scalar_lea.vmem [#allocation2], %s1035
          %1037 = dma.done %s1034, 16
        $region48: #{agg_model_forward.1} parent=43 // pred_fallthru
          _
      $region44: #{agg_model_forward.1} parent=5 // pred_fallthru
        _
    $region6: #{agg_model_forward.1} parent=1 // loop_footer
      %s17 = sadd.s32 1, %s13
    $region7: #{agg_model_forward.1} parent=1 // loop_footer_branch
      %12 = sbr.rel target = $region3
    $region8: #{agg_model_forward.1} parent=1 // loop_exit
      _
    %1038 = vsyncpa [#allocation3], 1
    %s1039 = scalar_lea.sflag [#allocation3], 1
    %1040 = vsyncpa %s1039, 1

</llo_original>
